<compile_context>
chip_gen: v5e
topology: v5e:2x2
jax: 0.10.0
libtpu: 0.0.40
codegen_flags: <defaults>
</compile_context>

<pallas_src>
import jax
import jax.numpy as jnp
from jax.experimental import pallas as pl
from jax.experimental.pallas import tpu as pltpu


def _sender3_kernel(idx_ref, logp_ref, out_ref):
    # idx_ref : (TB, 1) int32 color ids for this batch tile (VMEM)
    # logp_ref: (n_colors, TV) pre-softmaxed log-prob table tile (VMEM)
    # out_ref : (TB, TV) gathered log-prob rows (sublane/lane dense)
    n_colors = logp_ref.shape[0]

    idx = idx_ref[...]            # (TB, 1) int32
    logp = logp_ref[...]          # (n_colors, TV) f32

    # Row gather as a VPU select-accumulate unrolled over n_colors.
    # idx is clamped to [0, n_colors) in the wrapper, so every output row is
    # overwritten by exactly one select; the zeros init never survives.
    acc = jnp.zeros(out_ref.shape, jnp.float32)
    for c in range(n_colors):                       # static unroll (n_colors small)
        acc = jnp.where(idx == c, logp[c:c + 1, :], acc)

    out_ref[...] = acc            # keep f32 (cast to bf16 here if downstream allows)


def sender3_forward(x, emb_weight, *, batch_tile=2048, vocab_tile=512):
    """x: (B, F) float array with color ids in column 0; emb_weight: (n_colors, V).

    Returns (B, 1, V) float32 log-softmax over the vocab axis (Sender3.forward).
    """
    B = x.shape[0]
    n_colors, V = emb_weight.shape

    # Glue: x[:, 0:1].long(); clamp so a bad id can never drive an OOB gather.
    idx = jnp.clip(x[:, 0].astype(jnp.int32), 0, n_colors - 1)      # (B,)

    # HOISTED: log_softmax computed exactly once on the unpadded table
    # (n_colors x V, a few KiB) — plain XLA, outside the grid loop.
    logp = jax.nn.log_softmax(emb_weight.astype(jnp.float32), axis=-1)

    # Vocab tiling: lane-dense tiles, bounded so huge vocabs stay within the
    # v7x VMEM budget. Pad with zeros (no softmax in the kernel -> padding
    # value is irrelevant; padded columns are sliced off below).
    TV = min(pl.cdiv(V, 128) * 128, max(128, pl.cdiv(vocab_tile, 128) * 128))
    V_pad = pl.cdiv(V, TV) * TV
    if V_pad != V:
        logp = jnp.pad(logp, ((0, 0), (0, V_pad - V)))
    num_vt = V_pad // TV

    # Batch tile: big enough to amortize the ~0.35 us per-grid-step overhead
    # (>= ~1 MiB of output per step at the default sizes), capped for small B.
    TB = max(8, min(pl.cdiv(batch_tile, 8) * 8, pl.cdiv(B, 8) * 8))
    B_pad = pl.cdiv(B, TB) * TB
    num_bt = B_pad // TB
    idx2d = jnp.pad(idx, (0, B_pad - B)).reshape(B_pad, 1)          # pad with id 0 (valid)

    # Explicit VMEM budget (double-buffered out + idx, resident table tile).
    # The table tile is n_colors*TV*4 bytes (tens of KiB) so double-buffering
    # it costs nothing; pl.Buffered(1) only matters for very large n_colors.
    out_buf = TB * TV * 4
    idx_buf = TB * 128 * 4                       # (TB, 1) block, lane-padded
    tbl_buf = pl.cdiv(n_colors, 8) * 8 * TV * 4
    est = 2 * out_buf + 2 * idx_buf + 2 * tbl_buf + (2 << 20)
    vmem_limit = min(max(est, 32 << 20), 48 << 20)   # safe on v5e/v6e/v7x

    # Grid: vocab outer (table tile constant across the inner batch sweep),
    # batch inner. Kernel body is grid-order agnostic.
    out2d = pl.pallas_call(
        _sender3_kernel,
        out_shape=jax.ShapeDtypeStruct((B_pad, V_pad), jnp.float32),
        grid=(num_vt, num_bt),
        in_specs=[
            pl.BlockSpec((TB, 1), lambda j, i: (i, 0)),             # per-tile ids
            pl.BlockSpec((n_colors, TV), lambda j, i: (0, j)),      # logp table tile
        ],
        out_specs=pl.BlockSpec((TB, TV), lambda j, i: (i, j)),      # lane-dense store
        compiler_params=pltpu.CompilerParams(
            # Both axes independent. On v7x, use pltpu.CORE_PARALLEL on the
            # batch axis if profiling shows a single TC doing all the work.
            dimension_semantics=("parallel", "parallel"),
            vmem_limit_bytes=vmem_limit,
        ),
    )(idx2d, logp)

    # Free layout plumbing back to PyTorch's (B, 1, V).
    return out2d[:B, :V].reshape(B, 1, V)


if __name__ == "__main__":
    # Small, module-consistent shapes. VOCAB=100 deliberately exercises the
    # pad-to-128-lanes + slice-off path.
    B = 8            # batch
    F_FEAT = 3       # per-sample feature vector; only column 0 is used
    N_COLORS = 16    # embedding rows
    VOCAB = 100      # vocab_size (not lane-aligned)

    key = jax.random.PRNGKey(0)
    k_idx, k_rest, k_emb = jax.random.split(key, 3)

    # Deterministic example input: integer color ids in column 0, noise elsewhere.
    ids = jax.random.randint(k_idx, (B, 1), 0, N_COLORS).astype(jnp.float32)
    rest = jax.random.normal(k_rest, (B, F_FEAT - 1), dtype=jnp.float32)
    x = jnp.concatenate([ids, rest], axis=1)                        # (B, F)

    # Deterministic parameter init (nn.Embedding default ~ N(0, 1)).
    emb_weight = jax.random.normal(k_emb, (N_COLORS, VOCAB), dtype=jnp.float32)

    out = jax.block_until_ready(sender3_forward(x, emb_weight))

    # Pure-JAX reference check of the same semantics.
    ref_idx = x[:, 0:1].astype(jnp.int32)                           # (B, 1)
    ref = jax.nn.log_softmax(emb_weight[ref_idx], axis=-1)          # (B, 1, V)
    assert out.shape == (B, 1, VOCAB)
    assert jnp.allclose(out, ref, atol=1e-5, rtol=1e-5), float(
        jnp.max(jnp.abs(out - ref)))

    print("KERNEL_OK")
</pallas_src>

<mosaic_0001>
module attributes {stable_mosaic.version = 11 : i64} {
  func.func @_sender3_kernel(%arg0: i32, %arg1: i32, %arg2: memref<8x1xi32, #tpu.memory_space<vmem>>, %arg3: memref<16x128xf32, #tpu.memory_space<vmem>>, %arg4: memref<8x128xf32, #tpu.memory_space<vmem>>) attributes {dimension_semantics = [#tpu.dimension_semantics<parallel>, #tpu.dimension_semantics<parallel>], iteration_bounds = array<i64: 1, 1>, scalar_prefetch = 0 : i64, scratch_operands = 0 : i64, tpu.core_type = #tpu.core_type<tc>, window_params = [{transform_indices = @transform_0, window_bounds = array<i64: 8, 1>}, {transform_indices = @transform_1, window_bounds = array<i64: 16, 128>}, {transform_indices = @transform_2, window_bounds = array<i64: 8, 128>}]} {
    %c0 = arith.constant 0 : index
    %c0_0 = arith.constant 0 : index
    %0 = vector.load %arg2[%c0, %c0_0] : memref<8x1xi32, #tpu.memory_space<vmem>>, vector<8x1xi32>
    %c0_1 = arith.constant 0 : index
    %c0_2 = arith.constant 0 : index
    %1 = vector.load %arg3[%c0_1, %c0_2] : memref<16x128xf32, #tpu.memory_space<vmem>>, vector<16x128xf32>
    %cst = arith.constant 0.000000e+00 : f32
    %2 = vector.broadcast %cst : f32 to vector<8x128xf32>
    %c0_i32 = arith.constant 0 : i32
    %3 = vector.broadcast %c0_i32 : i32 to vector<8x1xi32>
    %4 = arith.cmpi eq, %0, %3 : vector<8x1xi32>
    %5 = vector.extract_strided_slice %1 {offsets = [0, 0], sizes = [1, 128], strides = [1, 1]} : vector<16x128xf32> to vector<1x128xf32>
    %6 = vector.shape_cast %4 : vector<8x1xi1> to vector<8x1xi1>
    %7 = vector.broadcast %6 : vector<8x1xi1> to vector<8x128xi1>
    %8 = vector.shape_cast %5 : vector<1x128xf32> to vector<1x128xf32>
    %9 = vector.broadcast %8 : vector<1x128xf32> to vector<8x128xf32>
    %10 = arith.select %7, %9, %2 : vector<8x128xi1>, vector<8x128xf32>
    %c1_i32 = arith.constant 1 : i32
    %11 = vector.broadcast %c1_i32 : i32 to vector<8x1xi32>
    %12 = arith.cmpi eq, %0, %11 : vector<8x1xi32>
    %13 = vector.extract_strided_slice %1 {offsets = [1, 0], sizes = [1, 128], strides = [1, 1]} : vector<16x128xf32> to vector<1x128xf32>
    %14 = vector.shape_cast %12 : vector<8x1xi1> to vector<8x1xi1>
    %15 = vector.broadcast %14 : vector<8x1xi1> to vector<8x128xi1>
    %16 = vector.shape_cast %13 : vector<1x128xf32> to vector<1x128xf32>
    %17 = vector.broadcast %16 : vector<1x128xf32> to vector<8x128xf32>
    %18 = arith.select %15, %17, %10 : vector<8x128xi1>, vector<8x128xf32>
    %c2_i32 = arith.constant 2 : i32
    %19 = vector.broadcast %c2_i32 : i32 to vector<8x1xi32>
    %20 = arith.cmpi eq, %0, %19 : vector<8x1xi32>
    %21 = vector.extract_strided_slice %1 {offsets = [2, 0], sizes = [1, 128], strides = [1, 1]} : vector<16x128xf32> to vector<1x128xf32>
    %22 = vector.shape_cast %20 : vector<8x1xi1> to vector<8x1xi1>
    %23 = vector.broadcast %22 : vector<8x1xi1> to vector<8x128xi1>
    %24 = vector.shape_cast %21 : vector<1x128xf32> to vector<1x128xf32>
    %25 = vector.broadcast %24 : vector<1x128xf32> to vector<8x128xf32>
    %26 = arith.select %23, %25, %18 : vector<8x128xi1>, vector<8x128xf32>
    %c3_i32 = arith.constant 3 : i32
    %27 = vector.broadcast %c3_i32 : i32 to vector<8x1xi32>
    %28 = arith.cmpi eq, %0, %27 : vector<8x1xi32>
    %29 = vector.extract_strided_slice %1 {offsets = [3, 0], sizes = [1, 128], strides = [1, 1]} : vector<16x128xf32> to vector<1x128xf32>
    %30 = vector.shape_cast %28 : vector<8x1xi1> to vector<8x1xi1>
    %31 = vector.broadcast %30 : vector<8x1xi1> to vector<8x128xi1>
    %32 = vector.shape_cast %29 : vector<1x128xf32> to vector<1x128xf32>
    %33 = vector.broadcast %32 : vector<1x128xf32> to vector<8x128xf32>
    %34 = arith.select %31, %33, %26 : vector<8x128xi1>, vector<8x128xf32>
    %c4_i32 = arith.constant 4 : i32
    %35 = vector.broadcast %c4_i32 : i32 to vector<8x1xi32>
    %36 = arith.cmpi eq, %0, %35 : vector<8x1xi32>
    %37 = vector.extract_strided_slice %1 {offsets = [4, 0], sizes = [1, 128], strides = [1, 1]} : vector<16x128xf32> to vector<1x128xf32>
    %38 = vector.shape_cast %36 : vector<8x1xi1> to vector<8x1xi1>
    %39 = vector.broadcast %38 : vector<8x1xi1> to vector<8x128xi1>
    %40 = vector.shape_cast %37 : vector<1x128xf32> to vector<1x128xf32>
    %41 = vector.broadcast %40 : vector<1x128xf32> to vector<8x128xf32>
    %42 = arith.select %39, %41, %34 : vector<8x128xi1>, vector<8x128xf32>
    %c5_i32 = arith.constant 5 : i32
    %43 = vector.broadcast %c5_i32 : i32 to vector<8x1xi32>
    %44 = arith.cmpi eq, %0, %43 : vector<8x1xi32>
    %45 = vector.extract_strided_slice %1 {offsets = [5, 0], sizes = [1, 128], strides = [1, 1]} : vector<16x128xf32> to vector<1x128xf32>
    %46 = vector.shape_cast %44 : vector<8x1xi1> to vector<8x1xi1>
    %47 = vector.broadcast %46 : vector<8x1xi1> to vector<8x128xi1>
    %48 = vector.shape_cast %45 : vector<1x128xf32> to vector<1x128xf32>
    %49 = vector.broadcast %48 : vector<1x128xf32> to vector<8x128xf32>
    %50 = arith.select %47, %49, %42 : vector<8x128xi1>, vector<8x128xf32>
    %c6_i32 = arith.constant 6 : i32
    %51 = vector.broadcast %c6_i32 : i32 to vector<8x1xi32>
    %52 = arith.cmpi eq, %0, %51 : vector<8x1xi32>
    %53 = vector.extract_strided_slice %1 {offsets = [6, 0], sizes = [1, 128], strides = [1, 1]} : vector<16x128xf32> to vector<1x128xf32>
    %54 = vector.shape_cast %52 : vector<8x1xi1> to vector<8x1xi1>
    %55 = vector.broadcast %54 : vector<8x1xi1> to vector<8x128xi1>
    %56 = vector.shape_cast %53 : vector<1x128xf32> to vector<1x128xf32>
    %57 = vector.broadcast %56 : vector<1x128xf32> to vector<8x128xf32>
    %58 = arith.select %55, %57, %50 : vector<8x128xi1>, vector<8x128xf32>
    %c7_i32 = arith.constant 7 : i32
    %59 = vector.broadcast %c7_i32 : i32 to vector<8x1xi32>
    %60 = arith.cmpi eq, %0, %59 : vector<8x1xi32>
    %61 = vector.extract_strided_slice %1 {offsets = [7, 0], sizes = [1, 128], strides = [1, 1]} : vector<16x128xf32> to vector<1x128xf32>
    %62 = vector.shape_cast %60 : vector<8x1xi1> to vector<8x1xi1>
    %63 = vector.broadcast %62 : vector<8x1xi1> to vector<8x128xi1>
    %64 = vector.shape_cast %61 : vector<1x128xf32> to vector<1x128xf32>
    %65 = vector.broadcast %64 : vector<1x128xf32> to vector<8x128xf32>
    %66 = arith.select %63, %65, %58 : vector<8x128xi1>, vector<8x128xf32>
    %c8_i32 = arith.constant 8 : i32
    %67 = vector.broadcast %c8_i32 : i32 to vector<8x1xi32>
    %68 = arith.cmpi eq, %0, %67 : vector<8x1xi32>
    %69 = vector.extract_strided_slice %1 {offsets = [8, 0], sizes = [1, 128], strides = [1, 1]} : vector<16x128xf32> to vector<1x128xf32>
    %70 = vector.shape_cast %68 : vector<8x1xi1> to vector<8x1xi1>
    %71 = vector.broadcast %70 : vector<8x1xi1> to vector<8x128xi1>
    %72 = vector.shape_cast %69 : vector<1x128xf32> to vector<1x128xf32>
    %73 = vector.broadcast %72 : vector<1x128xf32> to vector<8x128xf32>
    %74 = arith.select %71, %73, %66 : vector<8x128xi1>, vector<8x128xf32>
    %c9_i32 = arith.constant 9 : i32
    %75 = vector.broadcast %c9_i32 : i32 to vector<8x1xi32>
    %76 = arith.cmpi eq, %0, %75 : vector<8x1xi32>
    %77 = vector.extract_strided_slice %1 {offsets = [9, 0], sizes = [1, 128], strides = [1, 1]} : vector<16x128xf32> to vector<1x128xf32>
    %78 = vector.shape_cast %76 : vector<8x1xi1> to vector<8x1xi1>
    %79 = vector.broadcast %78 : vector<8x1xi1> to vector<8x128xi1>
    %80 = vector.shape_cast %77 : vector<1x128xf32> to vector<1x128xf32>
    %81 = vector.broadcast %80 : vector<1x128xf32> to vector<8x128xf32>
    %82 = arith.select %79, %81, %74 : vector<8x128xi1>, vector<8x128xf32>
    %c10_i32 = arith.constant 10 : i32
    %83 = vector.broadcast %c10_i32 : i32 to vector<8x1xi32>
    %84 = arith.cmpi eq, %0, %83 : vector<8x1xi32>
    %85 = vector.extract_strided_slice %1 {offsets = [10, 0], sizes = [1, 128], strides = [1, 1]} : vector<16x128xf32> to vector<1x128xf32>
    %86 = vector.shape_cast %84 : vector<8x1xi1> to vector<8x1xi1>
    %87 = vector.broadcast %86 : vector<8x1xi1> to vector<8x128xi1>
    %88 = vector.shape_cast %85 : vector<1x128xf32> to vector<1x128xf32>
    %89 = vector.broadcast %88 : vector<1x128xf32> to vector<8x128xf32>
    %90 = arith.select %87, %89, %82 : vector<8x128xi1>, vector<8x128xf32>
    %c11_i32 = arith.constant 11 : i32
    %91 = vector.broadcast %c11_i32 : i32 to vector<8x1xi32>
    %92 = arith.cmpi eq, %0, %91 : vector<8x1xi32>
    %93 = vector.extract_strided_slice %1 {offsets = [11, 0], sizes = [1, 128], strides = [1, 1]} : vector<16x128xf32> to vector<1x128xf32>
    %94 = vector.shape_cast %92 : vector<8x1xi1> to vector<8x1xi1>
    %95 = vector.broadcast %94 : vector<8x1xi1> to vector<8x128xi1>
    %96 = vector.shape_cast %93 : vector<1x128xf32> to vector<1x128xf32>
    %97 = vector.broadcast %96 : vector<1x128xf32> to vector<8x128xf32>
    %98 = arith.select %95, %97, %90 : vector<8x128xi1>, vector<8x128xf32>
    %c12_i32 = arith.constant 12 : i32
    %99 = vector.broadcast %c12_i32 : i32 to vector<8x1xi32>
    %100 = arith.cmpi eq, %0, %99 : vector<8x1xi32>
    %101 = vector.extract_strided_slice %1 {offsets = [12, 0], sizes = [1, 128], strides = [1, 1]} : vector<16x128xf32> to vector<1x128xf32>
    %102 = vector.shape_cast %100 : vector<8x1xi1> to vector<8x1xi1>
    %103 = vector.broadcast %102 : vector<8x1xi1> to vector<8x128xi1>
    %104 = vector.shape_cast %101 : vector<1x128xf32> to vector<1x128xf32>
    %105 = vector.broadcast %104 : vector<1x128xf32> to vector<8x128xf32>
    %106 = arith.select %103, %105, %98 : vector<8x128xi1>, vector<8x128xf32>
    %c13_i32 = arith.constant 13 : i32
    %107 = vector.broadcast %c13_i32 : i32 to vector<8x1xi32>
    %108 = arith.cmpi eq, %0, %107 : vector<8x1xi32>
    %109 = vector.extract_strided_slice %1 {offsets = [13, 0], sizes = [1, 128], strides = [1, 1]} : vector<16x128xf32> to vector<1x128xf32>
    %110 = vector.shape_cast %108 : vector<8x1xi1> to vector<8x1xi1>
    %111 = vector.broadcast %110 : vector<8x1xi1> to vector<8x128xi1>
    %112 = vector.shape_cast %109 : vector<1x128xf32> to vector<1x128xf32>
    %113 = vector.broadcast %112 : vector<1x128xf32> to vector<8x128xf32>
    %114 = arith.select %111, %113, %106 : vector<8x128xi1>, vector<8x128xf32>
    %c14_i32 = arith.constant 14 : i32
    %115 = vector.broadcast %c14_i32 : i32 to vector<8x1xi32>
    %116 = arith.cmpi eq, %0, %115 : vector<8x1xi32>
    %117 = vector.extract_strided_slice %1 {offsets = [14, 0], sizes = [1, 128], strides = [1, 1]} : vector<16x128xf32> to vector<1x128xf32>
    %118 = vector.shape_cast %116 : vector<8x1xi1> to vector<8x1xi1>
    %119 = vector.broadcast %118 : vector<8x1xi1> to vector<8x128xi1>
    %120 = vector.shape_cast %117 : vector<1x128xf32> to vector<1x128xf32>
    %121 = vector.broadcast %120 : vector<1x128xf32> to vector<8x128xf32>
    %122 = arith.select %119, %121, %114 : vector<8x128xi1>, vector<8x128xf32>
    %c15_i32 = arith.constant 15 : i32
    %123 = vector.broadcast %c15_i32 : i32 to vector<8x1xi32>
    %124 = arith.cmpi eq, %0, %123 : vector<8x1xi32>
    %125 = vector.extract_strided_slice %1 {offsets = [15, 0], sizes = [1, 128], strides = [1, 1]} : vector<16x128xf32> to vector<1x128xf32>
    %126 = vector.shape_cast %124 : vector<8x1xi1> to vector<8x1xi1>
    %127 = vector.broadcast %126 : vector<8x1xi1> to vector<8x128xi1>
    %128 = vector.shape_cast %125 : vector<1x128xf32> to vector<1x128xf32>
    %129 = vector.broadcast %128 : vector<1x128xf32> to vector<8x128xf32>
    %130 = arith.select %127, %129, %122 : vector<8x128xi1>, vector<8x128xf32>
    %c0_3 = arith.constant 0 : index
    %c0_4 = arith.constant 0 : index
    %131 = vector.load %arg4[%c0_3, %c0_4] : memref<8x128xf32, #tpu.memory_space<vmem>>, vector<8x128xf32>
    tpu.vector_store %arg4[%c0_3, %c0_4], %130 {strides = array<i32>} : memref<8x128xf32, #tpu.memory_space<vmem>>, vector<8x128xf32>,
    return
  }
  func.func @transform_0(%arg0: i32, %arg1: i32) -> (i32, i32) {
    %c0_i32 = arith.constant 0 : i32
    %c0_i32_0 = arith.constant 0 : i32
    return %arg1, %c0_i32 : i32, i32
  }
  func.func @transform_1(%arg0: i32, %arg1: i32) -> (i32, i32) {
    %c0_i32 = arith.constant 0 : i32
    %c0_i32_0 = arith.constant 0 : i32
    return %c0_i32, %arg0 : i32, i32
  }
  func.func @transform_2(%arg0: i32, %arg1: i32) -> (i32, i32) {
    %c0_i32 = arith.constant 0 : i32
    return %arg1, %arg0 : i32, i32
  }
}

</mosaic_0001>

<llo_original>
// kernel: tpu_custom_call.1
$region0: #{tpu_custom_call.1}
  #allocation0 [shape = 'u32[]', space=smem, size = 0x4, offset = 0x4, fixed_abs, tag = 'smem constant byte address 0x4 - core index']
  #allocation1 [shape = 'u32[72,128]{1,0:T(1,128)}', space=vmem, size = 0x9000, scoped, tag = 'internal scratch']
  %s0 = inlined_call_operand.vmem [shape: s32[8,1], index: 0, kind: input, shape index: {}]
  %s1 = inlined_call_operand.hbm [shape: f32[16,128], index: 1, kind: input, shape index: {}]
  %s2 = inlined_call_operand.hbm [shape: f32[8,128], index: 2, kind: output, shape index: {}]
  %s3 = sld [smem:[#allocation0]]
  $region22: #{tpu_custom_call.1} parent=0
    _
  %s5 = ssub.s32 1, %s3
  %s6 = scalar_select 0, %s5, %s3
  $region1: #{tpu_custom_call.1} parent=0
    #allocation2 [shape = 'u8[8192]{0}', space=vmem, size = 0x2000, scoped, tag = 'input window, operand 1, single buffered']
    #allocation3 [shape = 's32[1]{0}', space=sflag, size = 0x4, scoped, tag = 'scoped memory for tpu_custom_call.1']
    #allocation4 [shape = 's32[1]{0}', space=sflag, size = 0x4, scoped, tag = 'scoped memory for tpu_custom_call.1']
    #allocation5 [shape = 'u8[4096]{0}', space=vmem, size = 0x1000, scoped, tag = 'output window, operand 0, single buffered']
    %7 = vsyncpa [#allocation3], 0
    %8 = vsyncpa [#allocation4], 0
    // Predicated region
    $region2: #{tpu_custom_call.1} parent=1 // pred_check
      _
    $region3: #{tpu_custom_call.1} parent=1 // pred_check_branch
      %10 = sbr.rel (0) target = $region5
    $region4: #{tpu_custom_call.1} parent=1 // pred_region
      _
    $region5: #{tpu_custom_call.1} parent=1 // pred_fallthru
      _
    // Predicated region
    $region6: #{tpu_custom_call.1} parent=1 // pred_check
      _
    $region7: #{tpu_custom_call.1} parent=1 // pred_check_branch
      %12 = sbr.rel (0) target = $region9
    $region8: #{tpu_custom_call.1} parent=1 // pred_region
      %14 = vsyncadd [#allocation3], 0
      %s15 = sshll.u32 %s1, 4
      %s16 = int_to_ptr.hbm [resolvable:$true] %s15
      %s17 = sshll.u32 [#allocation2], 4
      %s18 = int_to_ptr.vmem [resolvable:$true] %s17
      %23 = dma.hbm_to_vmem [thread:$0]  %s16, 256, %s18, [#allocation3], 128, 128, 8
    $region9: #{tpu_custom_call.1} parent=1 // pred_fallthru
      _
    // Predicated region
    $region10: #{tpu_custom_call.1} parent=1 // pred_check
      _
    $region11: #{tpu_custom_call.1} parent=1 // pred_check_branch
      %25 = sbr.rel (0) target = $region13
    $region12: #{tpu_custom_call.1} parent=1 // pred_region
      %27 = dma.done [#allocation3], 256
    $region13: #{tpu_custom_call.1} parent=1 // pred_fallthru
      _
    %v28 = vld [vmem:[%s0] sm:$0xff]
    %v29 = vld [vmem:[#allocation2] sm:$0xff]
    %v30 = vld [vmem:[#allocation2 + $0x8] sm:$0xff]
    %vm31 = vcmp.eq.s32.totalorder %v28, 0
    %v32 = vsel %vm31, 1, 0
    %33 = vset.pattern.permute.xlu0 0
    %34 = vperm.xlu0 %33, %v32
    %v35 = vpop.permute.xlu0 %34
    %vm36 = vcmp.eq.s32.totalorder %v35, 1
    %v37 = vperm.slane %v29, 0
    %v38 = vsel %vm36, %v37, 0.0
    %vm39 = vcmp.eq.s32.totalorder %v28, 1
    %v40 = vsel %vm39, 1, 0
    %41 = vset.pattern.permute.xlu0 0
    %42 = vperm.xlu0 %41, %v40
    %v43 = vpop.permute.xlu0 %42
    %vm44 = vcmp.eq.s32.totalorder %v43, 1
    %v45 = vperm.slane %v29, 1
    %v46 = vsel %vm44, %v45, %v38
    %vm47 = vcmp.eq.s32.totalorder %v28, 2
    %v48 = vsel %vm47, 1, 0
    %49 = vset.pattern.permute.xlu0 0
    %50 = vperm.xlu0 %49, %v48
    %v51 = vpop.permute.xlu0 %50
    %vm52 = vcmp.eq.s32.totalorder %v51, 1
    %v53 = vperm.slane %v29, 2
    %v54 = vsel %vm52, %v53, %v46
    %vm55 = vcmp.eq.s32.totalorder %v28, 3
    %v56 = vsel %vm55, 1, 0
    %57 = vset.pattern.permute.xlu0 0
    %58 = vperm.xlu0 %57, %v56
    %v59 = vpop.permute.xlu0 %58
    %vm60 = vcmp.eq.s32.totalorder %v59, 1
    %v61 = vperm.slane %v29, 3
    %v62 = vsel %vm60, %v61, %v54
    %vm63 = vcmp.eq.s32.totalorder %v28, 4
    %v64 = vsel %vm63, 1, 0
    %65 = vset.pattern.permute.xlu0 0
    %66 = vperm.xlu0 %65, %v64
    %v67 = vpop.permute.xlu0 %66
    %vm68 = vcmp.eq.s32.totalorder %v67, 1
    %v69 = vperm.slane %v29, 4
    %v70 = vsel %vm68, %v69, %v62
    %vm71 = vcmp.eq.s32.totalorder %v28, 5
    %v72 = vsel %vm71, 1, 0
    %73 = vset.pattern.permute.xlu0 0
    %74 = vperm.xlu0 %73, %v72
    %v75 = vpop.permute.xlu0 %74
    %vm76 = vcmp.eq.s32.totalorder %v75, 1
    %v77 = vperm.slane %v29, 5
    %v78 = vsel %vm76, %v77, %v70
    %vm79 = vcmp.eq.s32.totalorder %v28, 6
    %v80 = vsel %vm79, 1, 0
    %81 = vset.pattern.permute.xlu0 0
    %82 = vperm.xlu0 %81, %v80
    %v83 = vpop.permute.xlu0 %82
    %vm84 = vcmp.eq.s32.totalorder %v83, 1
    %v85 = vperm.slane %v29, 6
    %v86 = vsel %vm84, %v85, %v78
    %vm87 = vcmp.eq.s32.totalorder %v28, 7
    %v88 = vsel %vm87, 1, 0
    %89 = vset.pattern.permute.xlu0 0
    %90 = vperm.xlu0 %89, %v88
    %v91 = vpop.permute.xlu0 %90
    %vm92 = vcmp.eq.s32.totalorder %v91, 1
    %v93 = vperm.slane %v29, 7
    %v94 = vsel %vm92, %v93, %v86
    %vm95 = vcmp.eq.s32.totalorder %v28, 8
    %v96 = vsel %vm95, 1, 0
    %97 = vset.pattern.permute.xlu0 0
    %98 = vperm.xlu0 %97, %v96
    %v99 = vpop.permute.xlu0 %98
    %vm100 = vcmp.eq.s32.totalorder %v99, 1
    %v101 = vperm.slane %v30, 0
    %v102 = vsel %vm100, %v101, %v94
    %vm103 = vcmp.eq.s32.totalorder %v28, 9
    %v104 = vsel %vm103, 1, 0
    %105 = vset.pattern.permute.xlu0 0
    %106 = vperm.xlu0 %105, %v104
    %v107 = vpop.permute.xlu0 %106
    %vm108 = vcmp.eq.s32.totalorder %v107, 1
    %v109 = vperm.slane %v30, 1
    %v110 = vsel %vm108, %v109, %v102
    %vm111 = vcmp.eq.s32.totalorder %v28, 10
    %v112 = vsel %vm111, 1, 0
    %113 = vset.pattern.permute.xlu0 0
    %114 = vperm.xlu0 %113, %v112
    %v115 = vpop.permute.xlu0 %114
    %vm116 = vcmp.eq.s32.totalorder %v115, 1
    %v117 = vperm.slane %v30, 2
    %v118 = vsel %vm116, %v117, %v110
    %vm119 = vcmp.eq.s32.totalorder %v28, 11
    %v120 = vsel %vm119, 1, 0
    %121 = vset.pattern.permute.xlu0 0
    %122 = vperm.xlu0 %121, %v120
    %v123 = vpop.permute.xlu0 %122
    %vm124 = vcmp.eq.s32.totalorder %v123, 1
    %v125 = vperm.slane %v30, 3
    %v126 = vsel %vm124, %v125, %v118
    %vm127 = vcmp.eq.s32.totalorder %v28, 12
    %v128 = vsel %vm127, 1, 0
    %129 = vset.pattern.permute.xlu0 0
    %130 = vperm.xlu0 %129, %v128
    %v131 = vpop.permute.xlu0 %130
    %vm132 = vcmp.eq.s32.totalorder %v131, 1
    %v133 = vperm.slane %v30, 4
    %v134 = vsel %vm132, %v133, %v126
    %vm135 = vcmp.eq.s32.totalorder %v28, 13
    %v136 = vsel %vm135, 1, 0
    %137 = vset.pattern.permute.xlu0 0
    %138 = vperm.xlu0 %137, %v136
    %v139 = vpop.permute.xlu0 %138
    %vm140 = vcmp.eq.s32.totalorder %v139, 1
    %v141 = vperm.slane %v30, 5
    %v142 = vsel %vm140, %v141, %v134
    %vm143 = vcmp.eq.s32.totalorder %v28, 14
    %v144 = vsel %vm143, 1, 0
    %145 = vset.pattern.permute.xlu0 0
    %146 = vperm.xlu0 %145, %v144
    %v147 = vpop.permute.xlu0 %146
    %vm148 = vcmp.eq.s32.totalorder %v147, 1
    %v149 = vperm.slane %v30, 6
    %v150 = vsel %vm148, %v149, %v142
    %vm151 = vcmp.eq.s32.totalorder %v28, 15
    %v152 = vsel %vm151, 1, 0
    %153 = vset.pattern.permute.xlu0 0
    %154 = vperm.xlu0 %153, %v152
    %v155 = vpop.permute.xlu0 %154
    %vm156 = vcmp.eq.s32.totalorder %v155, 1
    %v157 = vperm.slane %v30, 7
    %v158 = vsel %vm156, %v157, %v150
    %159 = vst [vmem:[#allocation5] sm:$0xff] %v158
    // Predicated region
    $region14: #{tpu_custom_call.1} parent=1 // pred_check
      _
    $region15: #{tpu_custom_call.1} parent=1 // pred_check_branch
      %161 = sbr.rel (0) target = $region17
    $region16: #{tpu_custom_call.1} parent=1 // pred_region
      %163 = vsyncadd [#allocation4], 0
      %s165 = sshll.u32 [#allocation5], 4
      %s166 = int_to_ptr.vmem [resolvable:$true] %s165
      %s167 = sshll.u32 %s2, 4
      %s168 = int_to_ptr.hbm [resolvable:$true] %s167
      %170 = dma.vmem_to_hbm [thread:$0]  %s166, 128, %s168, [#allocation4]
    $region17: #{tpu_custom_call.1} parent=1 // pred_fallthru
      _
    // Predicated region
    $region18: #{tpu_custom_call.1} parent=1 // pred_check
      _
    $region19: #{tpu_custom_call.1} parent=1 // pred_check_branch
      %172 = sbr.rel (0) target = $region21
    $region20: #{tpu_custom_call.1} parent=1 // pred_region
      %174 = dma.done [#allocation4], 128
    $region21: #{tpu_custom_call.1} parent=1 // pred_fallthru
      _
    %175 = vsyncpa [#allocation3], 1
    %176 = vsyncpa [#allocation4], 1

</llo_original>
